<compile_context>
chip_gen: v7x
topology: tpu7x:2x2x1
jax: 0.10.0
libtpu: 0.0.40
codegen_flags: <defaults>
</compile_context>

<pallas_src>
import jax
import jax.numpy as jnp
from jax.experimental import pallas as pl
from jax.experimental.pallas import tpu as pltpu


def attention_kernel(z_ref, w1_ref, b1_ref, w2_ref, e_ref, f_ref,
                     out_ref, beta_ref):
    # z_ref:    (tn, M*D)   lane-dense node tile
    # w1_ref:   (M*D, M*H)  block-diagonal Linear1 weight
    # b1_ref:   (1, M*H)    Linear1 bias tiled per view
    # w2_ref:   (M*H, M)    block-diagonal Linear2 weight (one column per view)
    # e_ref:    (M, M*D)    expands beta[:, m] across that view's D lanes
    # f_ref:    (M*D, D)    folds the M views back onto D output lanes
    # out_ref:  (tn, D)
    # beta_ref: (tn, M)
    z = z_ref[...]                                                   # (tn, M*D)

    h = jnp.tanh(
        jnp.dot(z, w1_ref[...], preferred_element_type=jnp.float32)
        + b1_ref[...]
    )                                                                # (tn, M*H)

    scores = jnp.dot(h, w2_ref[...],
                     preferred_element_type=jnp.float32)             # (tn, M)

    # softmax over the M views (last axis, 2-D — no trailing dim of 1)
    s_max = jnp.max(scores, axis=-1, keepdims=True)                  # (tn, 1)
    e = jnp.exp(scores - s_max)                                      # (tn, M)
    beta = e / jnp.sum(e, axis=-1, keepdims=True)                    # (tn, M)

    # out[n, d] = sum_m beta[n, m] * z[n, m*D + d]
    beta_wide = jnp.dot(beta, e_ref[...],
                        preferred_element_type=jnp.float32)          # (tn, M*D)
    out = jnp.dot(beta_wide * z, f_ref[...],
                  preferred_element_type=jnp.float32)                # (tn, D)

    out_ref[...] = out.astype(out_ref.dtype)
    beta_ref[...] = beta.astype(beta_ref.dtype)


def _round_up(x, m):
    return ((x + m - 1) // m) * m


def attention_forward(z, w1, b1, w2, *, tn=1024, vmem_limit_bytes=None):
    N, M, D = z.shape
    H = w1.shape[1]

    # Lane-dense view of z (metadata-only reshape in XLA).
    z_flat = z.astype(jnp.float32).reshape(N, M * D)

    # Pick the node tile: large to amortize per-grid-step overhead, but keep at
    # least 2 grid steps when N allows (so v7x's two TensorCores both work).
    tn = max(8, min(tn, _round_up(pl.cdiv(N, 2), 8)))
    n_pad = _round_up(N, tn)
    if n_pad != N:
        z_flat = jnp.pad(z_flat, ((0, n_pad - N), (0, 0)))
    grid = (n_pad // tn,)

    # Block-diagonal / tiled weights so the per-view projection is one dense
    # matmul on the lane-dense z tile (built once in the wrapper, tiny arrays).
    eye_m = jnp.eye(M, dtype=jnp.float32)
    w1_blk = jnp.kron(eye_m, w1.astype(jnp.float32))                     # (M*D, M*H)
    b1_blk = jnp.tile(b1.reshape(1, H).astype(jnp.float32), (1, M))      # (1, M*H)
    w2_blk = jnp.kron(eye_m, w2.astype(jnp.float32))                     # (M*H, M)
    expand = jnp.kron(eye_m, jnp.ones((1, D), jnp.float32))              # (M, M*D)
    fold = jnp.kron(jnp.ones((M, 1), jnp.float32),
                    jnp.eye(D, dtype=jnp.float32))                       # (M*D, D)

    if vmem_limit_bytes is None:
        # double-buffered z/out/beta blocks + weights, with headroom;
        # keep comfortably under v7x's 64 MiB physical VMEM.
        blk_bytes = 4 * tn * (M * D + D + M)
        wgt_bytes = 4 * (M * D * M * H + M * H + M * H * M
                         + M * M * D + M * D * D)
        vmem_limit_bytes = min(max(4 * blk_bytes + 2 * wgt_bytes + (4 << 20),
                                   16 << 20), 48 << 20)

    out_shape = (
        jax.ShapeDtypeStruct((n_pad, D), jnp.float32),
        jax.ShapeDtypeStruct((n_pad, M), jnp.float32),
    )

    out_pad, beta_pad = pl.pallas_call(
        attention_kernel,
        out_shape=out_shape,
        grid_spec=pltpu.PrefetchScalarGridSpec(
            num_scalar_prefetch=0,
            grid=grid,
            in_specs=[
                pl.BlockSpec((tn, M * D), lambda i: (i, 0)),     # z tile
                pl.BlockSpec((M * D, M * H), lambda i: (0, 0)),  # W1 block-diag
                pl.BlockSpec((1, M * H), lambda i: (0, 0)),      # b1 tiled
                pl.BlockSpec((M * H, M), lambda i: (0, 0)),      # W2 block-diag
                pl.BlockSpec((M, M * D), lambda i: (0, 0)),      # expand
                pl.BlockSpec((M * D, D), lambda i: (0, 0)),      # fold
            ],
            out_specs=[
                pl.BlockSpec((tn, D), lambda i: (i, 0)),         # out tile
                pl.BlockSpec((tn, M), lambda i: (i, 0)),         # beta tile
            ],
        ),
        compiler_params=pltpu.CompilerParams(
            dimension_semantics=("parallel",),
            vmem_limit_bytes=vmem_limit_bytes,
        ),
    )(z_flat, w1_blk, b1_blk, w2_blk, expand, fold)

    out = out_pad[:N]
    beta = beta_pad[:N].reshape(N, M, 1)   # restore the module's (N, M, 1) shape
    return out, beta


def reference_forward(z, w1, b1, w2):
    # pure-JAX reference matching the PyTorch module
    w = jnp.tanh(jnp.einsum("nmd,dh->nmh", z, w1) + b1) @ w2   # (N, M, 1)
    beta = jax.nn.softmax(w, axis=1)
    out = jnp.sum(beta * z, axis=1)
    return out, beta


if __name__ == "__main__":
    key = jax.random.PRNGKey(0)
    N, M, D, H = 16, 4, 32, 16     # nodes, views, in_size, hidden_size

    k_z, k_w1, k_b1, k_w2 = jax.random.split(key, 4)
    z = jax.random.normal(k_z, (N, M, D), dtype=jnp.float32)

    # deterministic parameter init (uniform, like torch Linear default scale)
    bound1 = 1.0 / (D ** 0.5)
    w1 = jax.random.uniform(k_w1, (D, H), jnp.float32, -bound1, bound1)
    b1 = jax.random.uniform(k_b1, (1, H), jnp.float32, -bound1, bound1)
    bound2 = 1.0 / (H ** 0.5)
    w2 = jax.random.uniform(k_w2, (H, 1), jnp.float32, -bound2, bound2)

    out, beta = attention_forward(z, w1, b1, w2)
    out = jax.block_until_ready(out)
    beta = jax.block_until_ready(beta)

    out_ref, beta_ref = reference_forward(z, w1, b1, w2)
    assert jnp.allclose(out, out_ref, atol=1e-5, rtol=1e-5)
    assert jnp.allclose(beta, beta_ref, atol=1e-5, rtol=1e-5)

    print("KERNEL_OK")
</pallas_src>

<mosaic_0001>
module attributes {stable_mosaic.version = 11 : i64} {
  func.func @attention_kernel(%arg0: i32, %arg1: memref<8x128xf32, #tpu.memory_space<vmem>>, %arg2: memref<128x64xf32, #tpu.memory_space<vmem>>, %arg3: memref<1x64xf32, #tpu.memory_space<vmem>>, %arg4: memref<64x4xf32, #tpu.memory_space<vmem>>, %arg5: memref<4x128xf32, #tpu.memory_space<vmem>>, %arg6: memref<128x32xf32, #tpu.memory_space<vmem>>, %arg7: memref<8x32xf32, #tpu.memory_space<vmem>>, %arg8: memref<8x4xf32, #tpu.memory_space<vmem>>) attributes {dimension_semantics = [#tpu.dimension_semantics<parallel>], iteration_bounds = array<i64: 2>, scalar_prefetch = 0 : i64, scratch_operands = 0 : i64, tpu.core_type = #tpu.core_type<tc>, window_params = [{transform_indices = @transform_0, window_bounds = array<i64: 8, 128>}, {pipeline_mode = #tpu.pipeline_mode<synchronous>, transform_indices = @transform_1, window_bounds = array<i64: 128, 64>}, {pipeline_mode = #tpu.pipeline_mode<synchronous>, transform_indices = @transform_2, window_bounds = array<i64: 1, 64>}, {pipeline_mode = #tpu.pipeline_mode<synchronous>, transform_indices = @transform_3, window_bounds = array<i64: 64, 4>}, {pipeline_mode = #tpu.pipeline_mode<synchronous>, transform_indices = @transform_4, window_bounds = array<i64: 4, 128>}, {pipeline_mode = #tpu.pipeline_mode<synchronous>, transform_indices = @transform_5, window_bounds = array<i64: 128, 32>}, {transform_indices = @transform_6, window_bounds = array<i64: 8, 32>}, {transform_indices = @transform_7, window_bounds = array<i64: 8, 4>}]} {
    %c0 = arith.constant 0 : index
    %c0_0 = arith.constant 0 : index
    %0 = vector.load %arg1[%c0, %c0_0] : memref<8x128xf32, #tpu.memory_space<vmem>>, vector<8x128xf32>
    %c0_1 = arith.constant 0 : index
    %c0_2 = arith.constant 0 : index
    %1 = vector.load %arg2[%c0_1, %c0_2] : memref<128x64xf32, #tpu.memory_space<vmem>>, vector<128x64xf32>
    %cst = arith.constant dense<0.000000e+00> : vector<8x64xf32>
    %2 = tpu.matmul %0, %1, %cst {dimension_numbers = #tpu.dot_dimension_numbers<[1], [0], [0], [1], [0, 0, 1, 1], [], []>} : vector<8x128xf32>, vector<128x64xf32>, vector<8x64xf32> -> vector<8x64xf32>
    %c0_3 = arith.constant 0 : index
    %c0_4 = arith.constant 0 : index
    %3 = vector.load %arg3[%c0_3, %c0_4] : memref<1x64xf32, #tpu.memory_space<vmem>>, vector<1x64xf32>
    %4 = vector.broadcast %3 : vector<1x64xf32> to vector<8x64xf32>
    %5 = arith.addf %2, %4 : vector<8x64xf32>
    %6 = math.tanh %5 : vector<8x64xf32>
    %c0_5 = arith.constant 0 : index
    %c0_6 = arith.constant 0 : index
    %7 = vector.load %arg4[%c0_5, %c0_6] : memref<64x4xf32, #tpu.memory_space<vmem>>, vector<64x4xf32>
    %cst_7 = arith.constant dense<0.000000e+00> : vector<8x4xf32>
    %8 = tpu.matmul %6, %7, %cst_7 {dimension_numbers = #tpu.dot_dimension_numbers<[1], [0], [0], [1], [0, 0, 1, 1], [], []>} : vector<8x64xf32>, vector<64x4xf32>, vector<8x4xf32> -> vector<8x4xf32>
    %cst_8 = arith.constant dense<0xFF800000> : vector<8xf32>
    %9 = vector.multi_reduction <maximumf>, %8, %cst_8 [1] : vector<8x4xf32> to vector<8xf32>
    %10 = vector.shape_cast %9 : vector<8xf32> to vector<8x1xf32>
    %11 = vector.broadcast %10 : vector<8x1xf32> to vector<8x4xf32>
    %12 = arith.subf %8, %11 : vector<8x4xf32>
    %13 = math.exp %12 : vector<8x4xf32>
    %cst_9 = arith.constant dense<0.000000e+00> : vector<8xf32>
    %14 = vector.multi_reduction <add>, %13, %cst_9 [1] : vector<8x4xf32> to vector<8xf32>
    %15 = vector.shape_cast %14 : vector<8xf32> to vector<8x1xf32>
    %16 = vector.broadcast %15 : vector<8x1xf32> to vector<8x4xf32>
    %17 = arith.divf %13, %16 : vector<8x4xf32>
    %c0_10 = arith.constant 0 : index
    %c0_11 = arith.constant 0 : index
    %18 = vector.load %arg5[%c0_10, %c0_11] : memref<4x128xf32, #tpu.memory_space<vmem>>, vector<4x128xf32>
    %cst_12 = arith.constant dense<0.000000e+00> : vector<8x128xf32>
    %19 = tpu.matmul %17, %18, %cst_12 {dimension_numbers = #tpu.dot_dimension_numbers<[1], [0], [0], [1], [0, 0, 1, 1], [], []>} : vector<8x4xf32>, vector<4x128xf32>, vector<8x128xf32> -> vector<8x128xf32>
    %20 = arith.mulf %19, %0 : vector<8x128xf32>
    %c0_13 = arith.constant 0 : index
    %c0_14 = arith.constant 0 : index
    %21 = vector.load %arg6[%c0_13, %c0_14] : memref<128x32xf32, #tpu.memory_space<vmem>>, vector<128x32xf32>
    %cst_15 = arith.constant dense<0.000000e+00> : vector<8x32xf32>
    %22 = tpu.matmul %20, %21, %cst_15 {dimension_numbers = #tpu.dot_dimension_numbers<[1], [0], [0], [1], [0, 0, 1, 1], [], []>} : vector<8x128xf32>, vector<128x32xf32>, vector<8x32xf32> -> vector<8x32xf32>
    %c0_16 = arith.constant 0 : index
    %c0_17 = arith.constant 0 : index
    %23 = vector.load %arg7[%c0_16, %c0_17] : memref<8x32xf32, #tpu.memory_space<vmem>>, vector<8x32xf32>
    tpu.vector_store %arg7[%c0_16, %c0_17], %22 {strides = array<i32>} : memref<8x32xf32, #tpu.memory_space<vmem>>, vector<8x32xf32>,
    %c0_18 = arith.constant 0 : index
    %c0_19 = arith.constant 0 : index
    %24 = vector.load %arg8[%c0_18, %c0_19] : memref<8x4xf32, #tpu.memory_space<vmem>>, vector<8x4xf32>
    tpu.vector_store %arg8[%c0_18, %c0_19], %17 {strides = array<i32>} : memref<8x4xf32, #tpu.memory_space<vmem>>, vector<8x4xf32>,
    return
  }
  func.func @transform_0(%arg0: i32) -> (i32, i32) {
    %c0_i32 = arith.constant 0 : i32
    %c0_i32_0 = arith.constant 0 : i32
    return %arg0, %c0_i32 : i32, i32
  }
  func.func @transform_1(%arg0: i32) -> (i32, i32) {
    %c0_i32 = arith.constant 0 : i32
    %c0_i32_0 = arith.constant 0 : i32
    %c0_i32_1 = arith.constant 0 : i32
    return %c0_i32, %c0_i32_0 : i32, i32
  }
  func.func @transform_2(%arg0: i32) -> (i32, i32) {
    %c0_i32 = arith.constant 0 : i32
    %c0_i32_0 = arith.constant 0 : i32
    %c0_i32_1 = arith.constant 0 : i32
    return %c0_i32, %c0_i32_0 : i32, i32
  }
  func.func @transform_3(%arg0: i32) -> (i32, i32) {
    %c0_i32 = arith.constant 0 : i32
    %c0_i32_0 = arith.constant 0 : i32
    %c0_i32_1 = arith.constant 0 : i32
    return %c0_i32, %c0_i32_0 : i32, i32
  }
  func.func @transform_4(%arg0: i32) -> (i32, i32) {
    %c0_i32 = arith.constant 0 : i32
    %c0_i32_0 = arith.constant 0 : i32
    %c0_i32_1 = arith.constant 0 : i32
    return %c0_i32, %c0_i32_0 : i32, i32
  }
  func.func @transform_5(%arg0: i32) -> (i32, i32) {
    %c0_i32 = arith.constant 0 : i32
    %c0_i32_0 = arith.constant 0 : i32
    %c0_i32_1 = arith.constant 0 : i32
    return %c0_i32, %c0_i32_0 : i32, i32
  }
  func.func @transform_6(%arg0: i32) -> (i32, i32) {
    %c0_i32 = arith.constant 0 : i32
    %c0_i32_0 = arith.constant 0 : i32
    return %arg0, %c0_i32 : i32, i32
  }
  func.func @transform_7(%arg0: i32) -> (i32, i32) {
    %c0_i32 = arith.constant 0 : i32
    %c0_i32_0 = arith.constant 0 : i32
    return %arg0, %c0_i32 : i32, i32
  }
}

</mosaic_0001>

<llo_original>
// kernel: tpu_custom_call.1
$region0: #{tpu_custom_call.1}
  #allocation0 [shape = 'u32[]', space=smem, size = 0x4, offset = 0x4, fixed_abs, tag = 'smem constant byte address 0x4 - core index']
  #allocation1 [shape = 'u32[144,128]{1,0:T(1,128)}', space=vmem, size = 0x12000, scoped, tag = 'internal scratch']
  %s0 = inlined_call_operand.vmem [shape: f32[16,128], index: 0, kind: input, shape index: {}]
  %s1 = inlined_call_operand.vmem [shape: f32[128,64], index: 1, kind: input, shape index: {}]
  %s2 = inlined_call_operand.vmem [shape: f32[1,64], index: 2, kind: input, shape index: {}]
  %s3 = inlined_call_operand.vmem [shape: f32[64,4], index: 3, kind: input, shape index: {}]
  %s4 = inlined_call_operand.vmem [shape: f32[4,128], index: 4, kind: input, shape index: {}]
  %s5 = inlined_call_operand.vmem [shape: f32[128,32], index: 5, kind: input, shape index: {}]
  %s6 = inlined_call_operand.hbm [shape: f32[16,32], index: 6, kind: output, shape index: {0}]
  %s7 = inlined_call_operand.vmem [shape: f32[16,4], index: 7, kind: output, shape index: {1}]
  %8 = xla_tuple %s6, %s7
  %s9 = sld [smem:[#allocation0]]
  $region65: #{tpu_custom_call.1} parent=0
    _
  %s11 = ssub.s32 1, %s9
  %s12 = scalar_select 0, %s11, %s9
  $region1: #{tpu_custom_call.1} parent=0
    #allocation2 [shape = 'u8[8192]{0}', space=vmem, size = 0x2000, scoped, tag = 'output window, operand 0']
    #allocation3 [shape = 's32[2]{0}', space=sflag, size = 0x8, scoped, tag = 'scoped memory for tpu_custom_call.1']
    %13 = vsyncpa [#allocation3], 0
    %s14 = scalar_lea.sflag [#allocation3], 1
    %15 = vsyncpa %s14, 0
    loop: start=0, step=1, limit=4
    $region2: #{tpu_custom_call.1} parent=1 // loop_pre_header
      _
    $region3: #{tpu_custom_call.1} parent=1 // loop_header
      %s17 = sphi 0, %s21
      %p18 = scmp.ge.s32.totalorder %s17, 4
      %s27 = sphi 0, %s29
      %s30 = sphi 0, %s27
      %s31 = sphi 0, %s30
      %s47 = sphi 0, %s31
      %s51 = sphi 0, %s51
      %s53 = sphi 0, %s51
      %s54 = sphi 0, %s53
      %s68 = sphi 0, %s54
      %s72 = sphi 0, %s72
      %s74 = sphi 0, %s72
      %s75 = sphi 0, %s74
      %s89 = sphi 0, %s75
      %s93 = sphi 0, %s93
      %s95 = sphi 0, %s93
      %s96 = sphi 0, %s95
      %s110 = sphi 0, %s96
      %s114 = sphi 0, %s114
      %s116 = sphi 0, %s114
      %s117 = sphi 0, %s116
      %s131 = sphi 0, %s117
      %s135 = sphi 0, %s135
      %s137 = sphi 0, %s135
      %s138 = sphi 0, %s137
      %s152 = sphi 0, %s138
      %s158 = sphi 0, %s160
      %s161 = sphi 0, %s158
      %s162 = sphi 0, %s161
      %s178 = sphi 0, %s162
      %s184 = sphi 0, %s186
      %s187 = sphi 0, %s184
      %s188 = sphi 0, %s187
      %s204 = sphi 0, %s188
    $region4: #{tpu_custom_call.1} parent=1 // loop_header_branch
      %20 = sbr.rel (%p18) target = $region8
    $region5: #{tpu_custom_call.1} parent=1 // loop_body
      %s22 = ssub.s32 %s17, 1
      %s23 = ssub.s32 %s17, 2
      %s24 = sadd.s32 %s17, 1
      %s25 = ssub.s32 %s17, %s24
      %p26 = scmp.eq.s32.totalorder %s25, 0
      %s28 = sadd.s32 %s27, 1
      %s29 = scalar_select %p26, %s27, %s28
      %p32 = pneg %p26
      %p33 = scmp.eq.s32.totalorder %s17, 1
      %p34 = por %p32, %p33
      %p35 = scmp.ne.s32.totalorder %s27, %s30
      %p36 = scmp.eq.s32.totalorder %s17, 0
      %p37 = por %p35, %p36
      %p38 = scmp.ne.s32.totalorder %s27, %s30
      %p39 = scmp.eq.s32.totalorder %s22, 1
      %p40 = por %p38, %p39
      %p41 = scmp.ne.s32.totalorder %s30, %s31
      %p42 = scmp.eq.s32.totalorder %s22, 0
      %p43 = por %p41, %p42
      %p44 = scmp.ne.s32.totalorder %s30, %s31
      %p45 = scmp.eq.s32.totalorder %s23, 1
      %p46 = por %p44, %p45
      %p48 = scmp.ne.s32.totalorder %s31, %s47
      %p49 = scmp.eq.s32.totalorder %s23, 0
      %p50 = por %p48, %p49
      %s52 = sadd.s32 %s51, 1
      %p55 = scmp.eq.s32.totalorder %s17, 1
      %p56 = scmp.ne.s32.totalorder %s51, %s53
      %p57 = scmp.eq.s32.totalorder %s17, 0
      %p58 = por %p56, %p57
      %p59 = scmp.ne.s32.totalorder %s51, %s53
      %p60 = scmp.eq.s32.totalorder %s22, 1
      %p61 = por %p59, %p60
      %p62 = scmp.ne.s32.totalorder %s53, %s54
      %p63 = scmp.eq.s32.totalorder %s22, 0
      %p64 = por %p62, %p63
      %p65 = scmp.ne.s32.totalorder %s53, %s54
      %p66 = scmp.eq.s32.totalorder %s23, 1
      %p67 = por %p65, %p66
      %p69 = scmp.ne.s32.totalorder %s54, %s68
      %p70 = scmp.eq.s32.totalorder %s23, 0
      %p71 = por %p69, %p70
      %s73 = sadd.s32 %s72, 1
      %p76 = scmp.eq.s32.totalorder %s17, 1
      %p77 = scmp.ne.s32.totalorder %s72, %s74
      %p78 = scmp.eq.s32.totalorder %s17, 0
      %p79 = por %p77, %p78
      %p80 = scmp.ne.s32.totalorder %s72, %s74
      %p81 = scmp.eq.s32.totalorder %s22, 1
      %p82 = por %p80, %p81
      %p83 = scmp.ne.s32.totalorder %s74, %s75
      %p84 = scmp.eq.s32.totalorder %s22, 0
      %p85 = por %p83, %p84
      %p86 = scmp.ne.s32.totalorder %s74, %s75
      %p87 = scmp.eq.s32.totalorder %s23, 1
      %p88 = por %p86, %p87
      %p90 = scmp.ne.s32.totalorder %s75, %s89
      %p91 = scmp.eq.s32.totalorder %s23, 0
      %p92 = por %p90, %p91
      %s94 = sadd.s32 %s93, 1
      %p97 = scmp.eq.s32.totalorder %s17, 1
      %p98 = scmp.ne.s32.totalorder %s93, %s95
      %p99 = scmp.eq.s32.totalorder %s17, 0
      %p100 = por %p98, %p99
      %p101 = scmp.ne.s32.totalorder %s93, %s95
      %p102 = scmp.eq.s32.totalorder %s22, 1
      %p103 = por %p101, %p102
      %p104 = scmp.ne.s32.totalorder %s95, %s96
      %p105 = scmp.eq.s32.totalorder %s22, 0
      %p106 = por %p104, %p105
      %p107 = scmp.ne.s32.totalorder %s95, %s96
      %p108 = scmp.eq.s32.totalorder %s23, 1
      %p109 = por %p107, %p108
      %p111 = scmp.ne.s32.totalorder %s96, %s110
      %p112 = scmp.eq.s32.totalorder %s23, 0
      %p113 = por %p111, %p112
      %s115 = sadd.s32 %s114, 1
      %p118 = scmp.eq.s32.totalorder %s17, 1
      %p119 = scmp.ne.s32.totalorder %s114, %s116
      %p120 = scmp.eq.s32.totalorder %s17, 0
      %p121 = por %p119, %p120
      %p122 = scmp.ne.s32.totalorder %s114, %s116
      %p123 = scmp.eq.s32.totalorder %s22, 1
      %p124 = por %p122, %p123
      %p125 = scmp.ne.s32.totalorder %s116, %s117
      %p126 = scmp.eq.s32.totalorder %s22, 0
      %p127 = por %p125, %p126
      %p128 = scmp.ne.s32.totalorder %s116, %s117
      %p129 = scmp.eq.s32.totalorder %s23, 1
      %p130 = por %p128, %p129
      %p132 = scmp.ne.s32.totalorder %s117, %s131
      %p133 = scmp.eq.s32.totalorder %s23, 0
      %p134 = por %p132, %p133
      %s136 = sadd.s32 %s135, 1
      %p139 = scmp.eq.s32.totalorder %s17, 1
      %p140 = scmp.ne.s32.totalorder %s135, %s137
      %p141 = scmp.eq.s32.totalorder %s17, 0
      %p142 = por %p140, %p141
      %p143 = scmp.ne.s32.totalorder %s135, %s137
      %p144 = scmp.eq.s32.totalorder %s22, 1
      %p145 = por %p143, %p144
      %p146 = scmp.ne.s32.totalorder %s137, %s138
      %p147 = scmp.eq.s32.totalorder %s22, 0
      %p148 = por %p146, %p147
      %p149 = scmp.ne.s32.totalorder %s137, %s138
      %p150 = scmp.eq.s32.totalorder %s23, 1
      %p151 = por %p149, %p150
      %p153 = scmp.ne.s32.totalorder %s138, %s152
      %p154 = scmp.eq.s32.totalorder %s23, 0
      %p155 = por %p153, %p154
      %s156 = ssub.s32 %s17, %s24
      %p157 = scmp.eq.s32.totalorder %s156, 0
      %s159 = sadd.s32 %s158, 1
      %s160 = scalar_select %p157, %s158, %s159
      %p163 = pneg %p157
      %p164 = scmp.eq.s32.totalorder %s17, 1
      %p165 = por %p163, %p164
      %p166 = scmp.ne.s32.totalorder %s158, %s161
      %p167 = scmp.eq.s32.totalorder %s17, 0
      %p168 = por %p166, %p167
      %p169 = scmp.ne.s32.totalorder %s158, %s161
      %p170 = scmp.eq.s32.totalorder %s22, 1
      %p171 = por %p169, %p170
      %p172 = scmp.ne.s32.totalorder %s161, %s162
      %p173 = scmp.eq.s32.totalorder %s22, 0
      %p174 = por %p172, %p173
      %p175 = scmp.ne.s32.totalorder %s161, %s162
      %p176 = scmp.eq.s32.totalorder %s23, 1
      %p177 = por %p175, %p176
      %p179 = scmp.ne.s32.totalorder %s162, %s178
      %p180 = scmp.eq.s32.totalorder %s23, 0
      %p181 = por %p179, %p180
      %s182 = ssub.s32 %s17, %s24
      %p183 = scmp.eq.s32.totalorder %s182, 0
      %s185 = sadd.s32 %s184, 1
      %s186 = scalar_select %p183, %s184, %s185
      %p189 = pneg %p183
      %p190 = scmp.eq.s32.totalorder %s17, 1
      %p191 = por %p189, %p190
      %p192 = scmp.ne.s32.totalorder %s184, %s187
      %p193 = scmp.eq.s32.totalorder %s17, 0
      %p194 = por %p192, %p193
      %p195 = scmp.ne.s32.totalorder %s184, %s187
      %p196 = scmp.eq.s32.totalorder %s22, 1
      %p197 = por %p195, %p196
      %p198 = scmp.ne.s32.totalorder %s187, %s188
      %p199 = scmp.eq.s32.totalorder %s22, 0
      %p200 = por %p198, %p199
      %p201 = scmp.ne.s32.totalorder %s187, %s188
      %p202 = scmp.eq.s32.totalorder %s23, 1
      %p203 = por %p201, %p202
      %p205 = scmp.ne.s32.totalorder %s188, %s204
      %p206 = scmp.eq.s32.totalorder %s23, 0
      %p207 = por %p205, %p206
      %p208 = scmp.le.s32.totalorder 1, %s17
      %p209 = scmp.lt.s32.totalorder %s17, 3
      %p210 = pnand %p208, %p209
      %p211 = pneg %p210
      // Predicated region
      $region9: #{tpu_custom_call.1} parent=5 // pred_check
        _
      $region10: #{tpu_custom_call.1} parent=5 // pred_check_branch
        %213 = sbr.rel (%p210) target = $region12
      $region11: #{tpu_custom_call.1} parent=5 // pred_region
        %s214 = ssub.s32 %s17, 1
        // Predicated region
        $region13: #{tpu_custom_call.1} parent=11 // pred_check
          %p215 = pneg %p64
        $region14: #{tpu_custom_call.1} parent=11 // pred_check_branch
          %217 = sbr.rel (%p215) target = $region16
        $region15: #{tpu_custom_call.1} parent=11 // pred_region
          _
        $region16: #{tpu_custom_call.1} parent=11 // pred_fallthru
          _
        // Predicated region
        $region17: #{tpu_custom_call.1} parent=11 // pred_check
          %p218 = pneg %p85
        $region18: #{tpu_custom_call.1} parent=11 // pred_check_branch
          %220 = sbr.rel (%p218) target = $region20
        $region19: #{tpu_custom_call.1} parent=11 // pred_region
          _
        $region20: #{tpu_custom_call.1} parent=11 // pred_fallthru
          _
        // Predicated region
        $region21: #{tpu_custom_call.1} parent=11 // pred_check
          %p221 = pneg %p106
        $region22: #{tpu_custom_call.1} parent=11 // pred_check_branch
          %223 = sbr.rel (%p221) target = $region24
        $region23: #{tpu_custom_call.1} parent=11 // pred_region
          _
        $region24: #{tpu_custom_call.1} parent=11 // pred_fallthru
          _
        // Predicated region
        $region25: #{tpu_custom_call.1} parent=11 // pred_check
          %p224 = pneg %p127
        $region26: #{tpu_custom_call.1} parent=11 // pred_check_branch
          %226 = sbr.rel (%p224) target = $region28
        $region27: #{tpu_custom_call.1} parent=11 // pred_region
          _
        $region28: #{tpu_custom_call.1} parent=11 // pred_fallthru
          _
        // Predicated region
        $region29: #{tpu_custom_call.1} parent=11 // pred_check
          %p227 = pneg %p148
        $region30: #{tpu_custom_call.1} parent=11 // pred_check_branch
          %229 = sbr.rel (%p227) target = $region32
        $region31: #{tpu_custom_call.1} parent=11 // pred_region
          _
        $region32: #{tpu_custom_call.1} parent=11 // pred_fallthru
          _
      $region12: #{tpu_custom_call.1} parent=5 // pred_fallthru
        _
      %p230 = scmp.lt.s32.totalorder %s17, 2
      // Predicated region
      $region33: #{tpu_custom_call.1} parent=5 // pred_check
        %p231 = pneg %p230
      $region34: #{tpu_custom_call.1} parent=5 // pred_check_branch
        %233 = sbr.rel (%p231) target = $region36
      $region35: #{tpu_custom_call.1} parent=5 // pred_region
        // Predicated region
        $region37: #{tpu_custom_call.1} parent=35 // pred_check
          %p234 = pneg %p37
        $region38: #{tpu_custom_call.1} parent=35 // pred_check_branch
          %236 = sbr.rel (%p234) target = $region40
        $region39: #{tpu_custom_call.1} parent=35 // pred_region
          %p237 = scmp.lt.s32.totalorder %s17, 1
          %s238 = scalar_select %p237, %s17, 1
          %s239 = smul.addr %s238, 8
          %s240 = scalar_lea.vmem %s0, %s239
        $region40: #{tpu_custom_call.1} parent=35 // pred_fallthru
          _
      $region36: #{tpu_custom_call.1} parent=5 // pred_fallthru
        _
      %p241 = scmp.le.s32.totalorder 1, %s17
      %p242 = scmp.lt.s32.totalorder %s17, 3
      %p243 = pnand %p241, %p242
      %p244 = pneg %p243
      // Predicated region
      $region41: #{tpu_custom_call.1} parent=5 // pred_check
        _
      $region42: #{tpu_custom_call.1} parent=5 // pred_check_branch
        %246 = sbr.rel (%p243) target = $region44
      $region43: #{tpu_custom_call.1} parent=5 // pred_region
        %s247 = ssub.s32 %s17, 1
        %p248 = scmp.lt.s32.totalorder %s22, 1
        %s249 = scalar_select %p248, %s22, 1
        %s250 = smul.addr %s249, 8
        %s251 = scalar_lea.vmem %s0, %s250
        %p252 = pneg %p43
        %p253 = pneg %p40
        %p254 = pneg %p64
        %p255 = pneg %p61
        %p256 = pneg %p85
        %p257 = pneg %p82
        %p258 = pneg %p106
        %p259 = pneg %p103
        %p260 = pneg %p127
        %p261 = pneg %p124
        %p262 = pneg %p148
        %p263 = pneg %p145
        %p264 = pneg %p174
        %p265 = pneg %p171
        %s266 = sand.u32 %s161, 1
        %s267 = scalar_lea.sflag [#allocation3], %s266
        %s268 = sand.u32 %s161, 1
        %s269 = smul.addr %s268, 8
        %s270 = scalar_lea.vmem [#allocation2], %s269
        %p271 = pneg %p200
        %p272 = pneg %p197
        %p273 = scmp.lt.s32.totalorder %s22, 1
        %s274 = scalar_select %p273, %s22, 1
        %s275 = smul.addr %s274, 8
        %s276 = scalar_lea.vmem %s7, %s275
        %p277 = scmp.lt.s32.totalorder %s22, 1
        %s278 = scalar_select %p277, %s22, 1
        %s279 = smul.addr %s278, 8
        %s280 = scalar_lea.vmem %s0, %s279
        %p281 = scmp.lt.s32.totalorder %s22, 1
        %s282 = scalar_select %p281, %s22, 1
        %s283 = smul.addr %s282, 8
        %s284 = scalar_lea.vmem %s7, %s283
        %v285 = vld [vmem:[%s280] sm:$0xff]
        %v286 = vld [vmem:[%s1] sm:$0xff]
        %v287 = vld [vmem:[%s1 + $0x8] sm:$0xff]
        %v288 = vld [vmem:[%s1 + $0x10] sm:$0xff]
        %v289 = vld [vmem:[%s1 + $0x18] sm:$0xff]
        %v290 = vld [vmem:[%s1 + $0x20] sm:$0xff]
        %v291 = vld [vmem:[%s1 + $0x28] sm:$0xff]
        %v292 = vld [vmem:[%s1 + $0x30] sm:$0xff]
        %v293 = vld [vmem:[%s1 + $0x38] sm:$0xff]
        %v294 = vld [vmem:[%s1 + $0x40] sm:$0xff]
        %v295 = vld [vmem:[%s1 + $0x48] sm:$0xff]
        %v296 = vld [vmem:[%s1 + $0x50] sm:$0xff]
        %v297 = vld [vmem:[%s1 + $0x58] sm:$0xff]
        %v298 = vld [vmem:[%s1 + $0x60] sm:$0xff]
        %v299 = vld [vmem:[%s1 + $0x68] sm:$0xff]
        %v300 = vld [vmem:[%s1 + $0x70] sm:$0xff]
        %v301 = vld [vmem:[%s1 + $0x78] sm:$0xff]
        %v302 = vld [vmem:[%s2] sm:$0x1]
        %v304 = vlaneseq
        %v305 = vshrl.u32 %v304, 7
        %v306 = vsub.s32 0, %v305
        %v307 = vrot.slane %v302, %v306
        %309 = vmatprep.subr.mxu0 0.0
        %310 = vmatpush1.msra.mxu0 %v286
        %311 = vmatprep.subr.mxu0 0.0
        %312 = vmatpush1.msra.mxu0 %v287
        %313 = vmatprep.subr.mxu0 0.0
        %314 = vmatpush1.msra.mxu0 %v288
        %315 = vmatprep.subr.mxu0 0.0
        %316 = vmatpush1.msra.mxu0 %v289
        %317 = vmatprep.subr.mxu0 0.0
        %318 = vmatpush1.msra.mxu0 %v290
        %319 = vmatprep.subr.mxu0 0.0
        %320 = vmatpush1.msra.mxu0 %v291
        %321 = vmatprep.subr.mxu0 0.0
        %322 = vmatpush1.msra.mxu0 %v292
        %323 = vmatprep.subr.mxu0 0.0
        %324 = vmatpush1.msra.mxu0 %v293
        %325 = vmatprep.subr.mxu0 0.0
        %326 = vmatpush1.msra.mxu0 %v294
        %327 = vmatprep.subr.mxu0 0.0
        %328 = vmatpush1.msra.mxu0 %v295
        %329 = vmatprep.subr.mxu0 0.0
        %330 = vmatpush1.msra.mxu0 %v296
        %331 = vmatprep.subr.mxu0 0.0
        %332 = vmatpush1.msra.mxu0 %v297
        %333 = vmatprep.subr.mxu0 0.0
        %334 = vmatpush1.msra.mxu0 %v298
        %335 = vmatprep.subr.mxu0 0.0
        %336 = vmatpush1.msra.mxu0 %v299
        %337 = vmatprep.subr.mxu0 0.0
        %338 = vmatpush1.msra.mxu0 %v300
        %339 = vmatprep.subr.mxu0 0.0
        %340 = vmatpush1.msra.mxu0 %v301
        %341 = vmatprep.subr.mxu0 0.0
        %342 = vmatpush1.msra.mxu0 0.0
        %343 = vmatprep.subr.mxu0 0.0
        %344 = vmatpush1.msra.mxu0 0.0
        %345 = vmatprep.subr.mxu0 0.0
        %346 = vmatpush1.msra.mxu0 0.0
        %347 = vmatprep.subr.mxu0 0.0
        %348 = vmatpush1.msra.mxu0 0.0
        %349 = vmatprep.subr.mxu0 0.0
        %350 = vmatpush1.msra.mxu0 0.0
        %351 = vmatprep.subr.mxu0 0.0
        %352 = vmatpush1.msra.mxu0 0.0
        %353 = vmatprep.subr.mxu0 0.0
        %354 = vmatpush1.msra.mxu0 0.0
        %355 = vmatprep.subr.mxu0 0.0
        %356 = vmatpush1.msra.mxu0 0.0
        %357 = vmatprep.subr.mxu0 0.0
        %358 = vmatpush1.msra.mxu0 0.0
        %359 = vmatprep.subr.mxu0 0.0
        %360 = vmatpush1.msra.mxu0 0.0
        %361 = vmatprep.subr.mxu0 0.0
        %362 = vmatpush1.msra.mxu0 0.0
        %363 = vmatprep.subr.mxu0 0.0
        %364 = vmatpush1.msra.mxu0 0.0
        %365 = vmatprep.subr.mxu0 0.0
        %366 = vmatpush1.msra.mxu0 0.0
        %367 = vmatprep.subr.mxu0 0.0
        %368 = vmatpush1.msra.mxu0 0.0
        %369 = vmatprep.subr.mxu0 0.0
        %370 = vmatpush1.msra.mxu0 0.0
        %371 = vmatprep.subr.mxu0 0.0
        %372 = vmatpush1.msra.mxu0 0.0
        %373 = vmatprep.mubr.f32.mxu0 0.0
        %374 = vmatmul.mubr.f32.gmra.mrb[0].mxu0 %v285
        %v375 = vpop.f32.mrb[0].mxu0
        %v376 = vadd.f32 %v307, %v375
        %v377 = vpop.f32.mrb[0].mxu0
        %378 = vdwg.mxu0
        %v379 = vtanh.pop %v376
        %v380 = vld [vmem:[%s3] sm:$0xff]
        %v381 = vld [vmem:[%s3 + $0x8] sm:$0xff]
        %v382 = vld [vmem:[%s3 + $0x10] sm:$0xff]
        %v383 = vld [vmem:[%s3 + $0x18] sm:$0xff]
        %v384 = vld [vmem:[%s3 + $0x20] sm:$0xff]
        %v385 = vld [vmem:[%s3 + $0x28] sm:$0xff]
        %v386 = vld [vmem:[%s3 + $0x30] sm:$0xff]
        %v387 = vld [vmem:[%s3 + $0x38] sm:$0xff]
        %vm388 = vcmask 523264
        %v390 = vsel %vm388, %v379, 0
        %392 = vmatprep.subr.mxu0 0.0
        %393 = vmatpush1.msra.mxu0 %v380
        %394 = vmatprep.subr.mxu0 0.0
        %395 = vmatpush1.msra.mxu0 %v381
        %396 = vmatprep.subr.mxu0 0.0
        %397 = vmatpush1.msra.mxu0 %v382
        %398 = vmatprep.subr.mxu0 0.0
        %399 = vmatpush1.msra.mxu0 %v383
        %400 = vmatprep.subr.mxu0 0.0
        %401 = vmatpush1.msra.mxu0 %v384
        %402 = vmatprep.subr.mxu0 0.0
        %403 = vmatpush1.msra.mxu0 %v385
        %404 = vmatprep.subr.mxu0 0.0
        %405 = vmatpush1.msra.mxu0 %v386
        %406 = vmatprep.subr.mxu0 0.0
        %407 = vmatpush1.msra.mxu0 %v387
        %408 = vmatprep.subr.mxu0 0.0
        %409 = vmatpush1.msra.mxu0 0.0
        %410 = vmatprep.subr.mxu0 0.0
        %411 = vmatpush1.msra.mxu0 0.0
        %412 = vmatprep.subr.mxu0 0.0
        %413 = vmatpush1.msra.mxu0 0.0
        %414 = vmatprep.subr.mxu0 0.0
        %415 = vmatpush1.msra.mxu0 0.0
        %416 = vmatprep.subr.mxu0 0.0
        %417 = vmatpush1.msra.mxu0 0.0
        %418 = vmatprep.subr.mxu0 0.0
        %419 = vmatpush1.msra.mxu0 0.0
        %420 = vmatprep.subr.mxu0 0.0
        %421 = vmatpush1.msra.mxu0 0.0
        %422 = vmatprep.subr.mxu0 0.0
        %423 = vmatpush1.msra.mxu0 0.0
        %424 = vmatprep.subr.mxu0 0.0
        %425 = vmatpush1.msra.mxu0 0.0
        %426 = vmatprep.subr.mxu0 0.0
        %427 = vmatpush1.msra.mxu0 0.0
        %428 = vmatprep.subr.mxu0 0.0
        %429 = vmatpush1.msra.mxu0 0.0
        %430 = vmatprep.subr.mxu0 0.0
        %431 = vmatpush1.msra.mxu0 0.0
        %432 = vmatprep.subr.mxu0 0.0
        %433 = vmatpush1.msra.mxu0 0.0
        %434 = vmatprep.subr.mxu0 0.0
        %435 = vmatpush1.msra.mxu0 0.0
        %436 = vmatprep.subr.mxu0 0.0
        %437 = vmatpush1.msra.mxu0 0.0
        %438 = vmatprep.subr.mxu0 0.0
        %439 = vmatpush1.msra.mxu0 0.0
        %440 = vmatprep.subr.mxu0 0.0
        %441 = vmatpush1.msra.mxu0 0.0
        %442 = vmatprep.subr.mxu0 0.0
        %443 = vmatpush1.msra.mxu0 0.0
        %444 = vmatprep.subr.mxu0 0.0
        %445 = vmatpush1.msra.mxu0 0.0
        %446 = vmatprep.subr.mxu0 0.0
        %447 = vmatpush1.msra.mxu0 0.0
        %448 = vmatprep.subr.mxu0 0.0
        %449 = vmatpush1.msra.mxu0 0.0
        %450 = vmatprep.subr.mxu0 0.0
        %451 = vmatpush1.msra.mxu0 0.0
        %452 = vmatprep.subr.mxu0 0.0
        %453 = vmatpush1.msra.mxu0 0.0
        %454 = vmatprep.subr.mxu0 0.0
        %455 = vmatpush1.msra.mxu0 0.0
        %456 = vmatprep.mubr.f32.mxu0 0.0
        %457 = vmatmul.mubr.f32.gmra.mrb[0].mxu0 %v390
        %v458 = vpop.f32.mrb[0].mxu0
        %v459 = vadd.f32 0.0, %v458
        %v460 = vpop.f32.mrb[0].mxu0
        %461 = vdwg.mxu0
        %vm462 = vcmask 31744
        %v463 = vsel %vm462, %v459, -inf
        %464 = vmax.xlane.f32.xlu0 %v463
        %v465 = vpop.xlane.xlu0 %464
        %v466 = vsub.f32 %v459, %v465
        %v467 = vmul.f32 %v466, 1.442695
        %v468 = vpow.pop %v467
        %v469 = vsel %vm462, %v468, 0.0
        %470 = vadd.xlane.f32.xlu0 %v469
        %v471 = vpop.xlane.xlu0 %470
        %v472 = vrcp.pop %v471
        %v473 = vmul.f32 %v468, %v472
        %v474 = vld [vmem:[%s4] sm:$0xf]
        %v476 = vsel %vm462, %v473, 0
        %vm478 = vcmask 1043456
        %v480 = vsel %vm478, %v474, 0
        %482 = vmatprep.subr.mxu0 0.0
        %483 = vmatpush1.msra.mxu0 %v480
        %484 = vmatprep.subr.mxu0 0.0
        %485 = vmatpush1.msra.mxu0 0.0
        %486 = vmatprep.subr.mxu0 0.0
        %487 = vmatpush1.msra.mxu0 0.0
        %488 = vmatprep.subr.mxu0 0.0
        %489 = vmatpush1.msra.mxu0 0.0
        %490 = vmatprep.subr.mxu0 0.0
        %491 = vmatpush1.msra.mxu0 0.0
        %492 = vmatprep.subr.mxu0 0.0
        %493 = vmatpush1.msra.mxu0 0.0
        %494 = vmatprep.subr.mxu0 0.0
        %495 = vmatpush1.msra.mxu0 0.0
        %496 = vmatprep.subr.mxu0 0.0
        %497 = vmatpush1.msra.mxu0 0.0
        %498 = vmatprep.subr.mxu0 0.0
        %499 = vmatpush1.msra.mxu0 0.0
        %500 = vmatprep.subr.mxu0 0.0
        %501 = vmatpush1.msra.mxu0 0.0
        %502 = vmatprep.subr.mxu0 0.0
        %503 = vmatpush1.msra.mxu0 0.0
        %504 = vmatprep.subr.mxu0 0.0
        %505 = vmatpush1.msra.mxu0 0.0
        %506 = vmatprep.subr.mxu0 0.0
        %507 = vmatpush1.msra.mxu0 0.0
        %508 = vmatprep.subr.mxu0 0.0
        %509 = vmatpush1.msra.mxu0 0.0
        %510 = vmatprep.subr.mxu0 0.0
        %511 = vmatpush1.msra.mxu0 0.0
        %512 = vmatprep.subr.mxu0 0.0
        %513 = vmatpush1.msra.mxu0 0.0
        %514 = vmatprep.subr.mxu0 0.0
        %515 = vmatpush1.msra.mxu0 0.0
        %516 = vmatprep.subr.mxu0 0.0
        %517 = vmatpush1.msra.mxu0 0.0
        %518 = vmatprep.subr.mxu0 0.0
        %519 = vmatpush1.msra.mxu0 0.0
        %520 = vmatprep.subr.mxu0 0.0
        %521 = vmatpush1.msra.mxu0 0.0
        %522 = vmatprep.subr.mxu0 0.0
        %523 = vmatpush1.msra.mxu0 0.0
        %524 = vmatprep.subr.mxu0 0.0
        %525 = vmatpush1.msra.mxu0 0.0
        %526 = vmatprep.subr.mxu0 0.0
        %527 = vmatpush1.msra.mxu0 0.0
        %528 = vmatprep.subr.mxu0 0.0
        %529 = vmatpush1.msra.mxu0 0.0
        %530 = vmatprep.subr.mxu0 0.0
        %531 = vmatpush1.msra.mxu0 0.0
        %532 = vmatprep.subr.mxu0 0.0
        %533 = vmatpush1.msra.mxu0 0.0
        %534 = vmatprep.subr.mxu0 0.0
        %535 = vmatpush1.msra.mxu0 0.0
        %536 = vmatprep.subr.mxu0 0.0
        %537 = vmatpush1.msra.mxu0 0.0
        %538 = vmatprep.subr.mxu0 0.0
        %539 = vmatpush1.msra.mxu0 0.0
        %540 = vmatprep.subr.mxu0 0.0
        %541 = vmatpush1.msra.mxu0 0.0
        %542 = vmatprep.subr.mxu0 0.0
        %543 = vmatpush1.msra.mxu0 0.0
        %544 = vmatprep.subr.mxu0 0.0
        %545 = vmatpush1.msra.mxu0 0.0
        %546 = vmatprep.mubr.f32.mxu0 0.0
        %547 = vmatmul.mubr.f32.gmra.mrb[0].mxu0 %v476
        %v548 = vpop.f32.mrb[0].mxu0
        %v549 = vadd.f32 0.0, %v548
        %v550 = vpop.f32.mrb[0].mxu0
        %551 = vdwg.mxu0
        %v552 = vmul.f32 %v549, %v285
        %v553 = vld [vmem:[%s5] sm:$0xff]
        %v554 = vld [vmem:[%s5 + $0x8] sm:$0xff]
        %v555 = vld [vmem:[%s5 + $0x10] sm:$0xff]
        %v556 = vld [vmem:[%s5 + $0x18] sm:$0xff]
        %v557 = vld [vmem:[%s5 + $0x20] sm:$0xff]
        %v558 = vld [vmem:[%s5 + $0x28] sm:$0xff]
        %v559 = vld [vmem:[%s5 + $0x30] sm:$0xff]
        %v560 = vld [vmem:[%s5 + $0x38] sm:$0xff]
        %v561 = vld [vmem:[%s5 + $0x40] sm:$0xff]
        %v562 = vld [vmem:[%s5 + $0x48] sm:$0xff]
        %v563 = vld [vmem:[%s5 + $0x50] sm:$0xff]
        %v564 = vld [vmem:[%s5 + $0x58] sm:$0xff]
        %v565 = vld [vmem:[%s5 + $0x60] sm:$0xff]
        %v566 = vld [vmem:[%s5 + $0x68] sm:$0xff]
        %v567 = vld [vmem:[%s5 + $0x70] sm:$0xff]
        %v568 = vld [vmem:[%s5 + $0x78] sm:$0xff]
        %569 = vmatprep.subr.mxu0 0.0
        %570 = vmatpush1.msra.mxu0 %v553
        %571 = vmatprep.subr.mxu0 0.0
        %572 = vmatpush1.msra.mxu0 %v554
        %573 = vmatprep.subr.mxu0 0.0
        %574 = vmatpush1.msra.mxu0 %v555
        %575 = vmatprep.subr.mxu0 0.0
        %576 = vmatpush1.msra.mxu0 %v556
        %577 = vmatprep.subr.mxu0 0.0
        %578 = vmatpush1.msra.mxu0 %v557
        %579 = vmatprep.subr.mxu0 0.0
        %580 = vmatpush1.msra.mxu0 %v558
        %581 = vmatprep.subr.mxu0 0.0
        %582 = vmatpush1.msra.mxu0 %v559
        %583 = vmatprep.subr.mxu0 0.0
        %584 = vmatpush1.msra.mxu0 %v560
        %585 = vmatprep.subr.mxu0 0.0
        %586 = vmatpush1.msra.mxu0 %v561
        %587 = vmatprep.subr.mxu0 0.0
        %588 = vmatpush1.msra.mxu0 %v562
        %589 = vmatprep.subr.mxu0 0.0
        %590 = vmatpush1.msra.mxu0 %v563
        %591 = vmatprep.subr.mxu0 0.0
        %592 = vmatpush1.msra.mxu0 %v564
        %593 = vmatprep.subr.mxu0 0.0
        %594 = vmatpush1.msra.mxu0 %v565
        %595 = vmatprep.subr.mxu0 0.0
        %596 = vmatpush1.msra.mxu0 %v566
        %597 = vmatprep.subr.mxu0 0.0
        %598 = vmatpush1.msra.mxu0 %v567
        %599 = vmatprep.subr.mxu0 0.0
        %600 = vmatpush1.msra.mxu0 %v568
        %601 = vmatprep.subr.mxu0 0.0
        %602 = vmatpush1.msra.mxu0 0.0
        %603 = vmatprep.subr.mxu0 0.0
        %604 = vmatpush1.msra.mxu0 0.0
        %605 = vmatprep.subr.mxu0 0.0
        %606 = vmatpush1.msra.mxu0 0.0
        %607 = vmatprep.subr.mxu0 0.0
        %608 = vmatpush1.msra.mxu0 0.0
        %609 = vmatprep.subr.mxu0 0.0
        %610 = vmatpush1.msra.mxu0 0.0
        %611 = vmatprep.subr.mxu0 0.0
        %612 = vmatpush1.msra.mxu0 0.0
        %613 = vmatprep.subr.mxu0 0.0
        %614 = vmatpush1.msra.mxu0 0.0
        %615 = vmatprep.subr.mxu0 0.0
        %616 = vmatpush1.msra.mxu0 0.0
        %617 = vmatprep.subr.mxu0 0.0
        %618 = vmatpush1.msra.mxu0 0.0
        %619 = vmatprep.subr.mxu0 0.0
        %620 = vmatpush1.msra.mxu0 0.0
        %621 = vmatprep.subr.mxu0 0.0
        %622 = vmatpush1.msra.mxu0 0.0
        %623 = vmatprep.subr.mxu0 0.0
        %624 = vmatpush1.msra.mxu0 0.0
        %625 = vmatprep.subr.mxu0 0.0
        %626 = vmatpush1.msra.mxu0 0.0
        %627 = vmatprep.subr.mxu0 0.0
        %628 = vmatpush1.msra.mxu0 0.0
        %629 = vmatprep.subr.mxu0 0.0
        %630 = vmatpush1.msra.mxu0 0.0
        %631 = vmatprep.subr.mxu0 0.0
        %632 = vmatpush1.msra.mxu0 0.0
        %633 = vmatprep.mubr.f32.mxu0 0.0
        %634 = vmatmul.mubr.f32.gmra.mrb[0].mxu0 %v552
        %v635 = vpop.f32.mrb[0].mxu0
        %v636 = vadd.f32 0.0, %v635
        %v637 = vpop.f32.mrb[0].mxu0
        %638 = vdwg.mxu0
        %vm639 = vcmask 261120
        %640 = vst.msk [vmem:[%s270] sm:$0xff] %vm639, %v636
        %641 = vst.msk [vmem:[%s284] sm:$0xff] %vm462, %v473
        %s642 = sand.u32 %s161, 1
        %s643 = scalar_lea.sflag [#allocation3], %s642
        %s644 = sand.u32 %s161, 1
        %s645 = smul.addr %s644, 8
        %s646 = scalar_lea.vmem [#allocation2], %s645
        %p647 = scmp.lt.s32.totalorder %s22, 1
        %s648 = scalar_select %p647, %s22, 1
        %s649 = smul.addr %s648, 8
        %s650 = scalar_lea.vmem %s7, %s649
        // Predicated region
        $region45: #{tpu_custom_call.1} parent=43 // pred_check
          %p651 = pneg %p171
        $region46: #{tpu_custom_call.1} parent=43 // pred_check_branch
          %653 = sbr.rel (%p651) target = $region48
        $region47: #{tpu_custom_call.1} parent=43 // pred_region
          %s655 = ssub.s32 128, 128
          %656 = vsyncadd %s643, %s655
          %s657 = smul.addr %s22, 128
          %s658 = scalar_lea.hbm %s6, %s657
          %s660 = sshll.u32 %s646, 4
          %s661 = int_to_ptr.vmem [resolvable:$true] %s660
          %663 = dma.vmem_to_hbm [thread:$0]  %s661, 128, %s658, %s643
        $region48: #{tpu_custom_call.1} parent=43 // pred_fallthru
          _
        // Predicated region
        $region49: #{tpu_custom_call.1} parent=43 // pred_check
          %p664 = pneg %p197
        $region50: #{tpu_custom_call.1} parent=43 // pred_check_branch
          %666 = sbr.rel (%p664) target = $region52
        $region51: #{tpu_custom_call.1} parent=43 // pred_region
          _
        $region52: #{tpu_custom_call.1} parent=43 // pred_fallthru
          _
      $region44: #{tpu_custom_call.1} parent=5 // pred_fallthru
        _
      %p667 = scmp.le.s32.totalorder 2, %s17
      // Predicated region
      $region53: #{tpu_custom_call.1} parent=5 // pred_check
        %p668 = pneg %p667
      $region54: #{tpu_custom_call.1} parent=5 // pred_check_branch
        %670 = sbr.rel (%p668) target = $region56
      $region55: #{tpu_custom_call.1} parent=5 // pred_region
        %s671 = ssub.s32 %s17, 2
        // Predicated region
        $region57: #{tpu_custom_call.1} parent=55 // pred_check
          %p672 = pneg %p177
        $region58: #{tpu_custom_call.1} parent=55 // pred_check_branch
          %674 = sbr.rel (%p672) target = $region60
        $region59: #{tpu_custom_call.1} parent=55 // pred_region
          %s675 = sand.u32 %s162, 1
          %s676 = scalar_lea.sflag [#allocation3], %s675
          %s677 = sand.u32 %s162, 1
          %s678 = smul.addr %s677, 8
          %s679 = scalar_lea.vmem [#allocation2], %s678
          %680 = dma.done %s676, 128
        $region60: #{tpu_custom_call.1} parent=55 // pred_fallthru
          _
        // Predicated region
        $region61: #{tpu_custom_call.1} parent=55 // pred_check
          %p681 = pneg %p203
        $region62: #{tpu_custom_call.1} parent=55 // pred_check_branch
          %683 = sbr.rel (%p681) target = $region64
        $region63: #{tpu_custom_call.1} parent=55 // pred_region
          %p684 = scmp.lt.s32.totalorder %s23, 1
          %s685 = scalar_select %p684, %s23, 1
          %s686 = smul.addr %s685, 8
          %s687 = scalar_lea.vmem %s7, %s686
        $region64: #{tpu_custom_call.1} parent=55 // pred_fallthru
          _
      $region56: #{tpu_custom_call.1} parent=5 // pred_fallthru
        _
    $region6: #{tpu_custom_call.1} parent=1 // loop_footer
      %s21 = sadd.s32 1, %s17
    $region7: #{tpu_custom_call.1} parent=1 // loop_footer_branch
      %16 = sbr.rel target = $region3
    $region8: #{tpu_custom_call.1} parent=1 // loop_exit
      _
    %688 = vsyncpa [#allocation3], 1
    %s689 = scalar_lea.sflag [#allocation3], 1
    %690 = vsyncpa %s689, 1

</llo_original>
